<compile_context>
chip_gen: v5e
topology: v5e:2x2
jax: 0.10.0
libtpu: 0.0.40
codegen_flags: <defaults>
</compile_context>

<pallas_src>
import jax
import jax.numpy as jnp
from jax.experimental import pallas as pl
from jax.experimental.pallas import tpu as pltpu


def actor_kernel(x_ref, w1_ref, b1_ref, w2_ref, b2_ref, w3_ref, b3_ref, o_ref):
    mm_dtype = w1_ref.dtype  # matmul operand dtype (f32 or bf16)

    x = x_ref[...].astype(mm_dtype)                                    # (TB, obs)

    # Linear 1 + Tanh  (f32 accumulation, f32 elementwise)
    h1 = jnp.dot(x, w1_ref[...], preferred_element_type=jnp.float32)
    h1 = jnp.tanh(h1 + b1_ref[...])                                    # (TB, 64) f32

    # Linear 2 + Tanh
    h2 = jnp.dot(h1.astype(mm_dtype), w2_ref[...],
                 preferred_element_type=jnp.float32)
    h2 = jnp.tanh(h2 + b2_ref[...])                                    # (TB, 64) f32

    # Linear 3 (+ padded columns carry bias -1e30 -> exp underflows to 0)
    logits = jnp.dot(h2.astype(mm_dtype), w3_ref[...],
                     preferred_element_type=jnp.float32)
    logits = logits + b3_ref[...]                                      # (TB, Apad) f32

    # Numerically-stable softmax over the lane-dense (128-wide) logits.
    m = jnp.max(logits, axis=-1, keepdims=True)
    e = jnp.exp(logits - m)
    denom = jnp.sum(e, axis=-1, keepdims=True)
    o_ref[...] = (e * pl.reciprocal(denom, approx=False)).astype(o_ref.dtype)


def actor_forward(x, w1, b1, w2, b2, w3, b3, *,
                  block_batch=256, matmul_dtype=jnp.float32):
    """x: (B, obs). Weights are (in, out) layout; biases are (1, out)."""
    B, obs_dim = x.shape
    hidden = w1.shape[1]
    n_actions = w3.shape[1]

    # --- lane-dense output: pad action dim to a multiple of 128 -------------
    a_pad = max(128, ((n_actions + 127) // 128) * 128)
    if a_pad != n_actions:
        w3p = jnp.zeros((hidden, a_pad), w3.dtype).at[:, :n_actions].set(w3)
        b3p = jnp.full((1, a_pad), -1e30, jnp.float32).at[:, :n_actions].set(
            b3.astype(jnp.float32))
    else:
        w3p = w3
        b3p = b3.astype(jnp.float32)

    # --- batch tiling: pad rows to a multiple of the (8-aligned) batch tile -
    tb = min(block_batch, ((B + 7) // 8) * 8)
    b_total = ((B + tb - 1) // tb) * tb
    xp = x if b_total == B else jnp.zeros((b_total, obs_dim), x.dtype).at[:B].set(x)

    # --- dtypes: matmul operands may be bf16; biases / elementwise stay f32 -
    xp = xp.astype(matmul_dtype)
    w1c = w1.astype(matmul_dtype)
    w2c = w2.astype(matmul_dtype)
    w3c = w3p.astype(matmul_dtype)
    b1c = b1.astype(jnp.float32)
    b2c = b2.astype(jnp.float32)
    b3c = b3p

    grid = (b_total // tb,)

    itemsize = jnp.dtype(matmul_dtype).itemsize
    flops = 2 * b_total * (obs_dim * hidden + hidden * hidden + hidden * a_pad)
    transcendentals = b_total * (2 * hidden + a_pad)   # tanh x2 + exp
    bytes_accessed = (
        b_total * obs_dim * itemsize                                     # x in
        + (obs_dim * hidden + hidden * hidden + hidden * a_pad) * itemsize  # weights
        + (2 * hidden + a_pad) * 4                                       # biases
        + b_total * a_pad * 4                                            # probs out
    )

    out = pl.pallas_call(
        actor_kernel,
        out_shape=jax.ShapeDtypeStruct((b_total, a_pad), jnp.float32),
        grid=grid,
        in_specs=[
            pl.BlockSpec((tb, obs_dim), lambda i: (i, 0)),        # x tile (streamed)
            pl.BlockSpec((obs_dim, hidden), lambda i: (0, 0)),    # w1 (resident)
            pl.BlockSpec((1, hidden), lambda i: (0, 0)),          # b1
            pl.BlockSpec((hidden, hidden), lambda i: (0, 0)),     # w2
            pl.BlockSpec((1, hidden), lambda i: (0, 0)),          # b2
            pl.BlockSpec((hidden, a_pad), lambda i: (0, 0)),      # w3 (padded)
            pl.BlockSpec((1, a_pad), lambda i: (0, 0)),           # b3 (padded)
        ],
        out_specs=pl.BlockSpec((tb, a_pad), lambda i: (i, 0)),
        compiler_params=pltpu.CompilerParams(
            dimension_semantics=("parallel",),
        ),
        cost_estimate=pl.CostEstimate(
            flops=int(flops),
            transcendentals=int(transcendentals),
            bytes_accessed=int(bytes_accessed),
        ),
    )(xp, w1c, b1c, w2c, b2c, w3c, b3c)

    return out[:B, :n_actions]


def init_params(key, obs_dim, hidden, n_actions):
    # Deterministic synthetic init (PyTorch-like uniform fan-in scaling).
    ks = jax.random.split(key, 6)

    def uniform(k, shape, fan_in):
        bound = 1.0 / jnp.sqrt(fan_in)
        return jax.random.uniform(k, shape, jnp.float32, -bound, bound)

    w1 = uniform(ks[0], (obs_dim, hidden), obs_dim)
    b1 = uniform(ks[1], (1, hidden), obs_dim)
    w2 = uniform(ks[2], (hidden, hidden), hidden)
    b2 = uniform(ks[3], (hidden, hidden), hidden)[:1]  # placeholder, replaced below
    b2 = uniform(ks[3], (1, hidden), hidden)
    w3 = uniform(ks[4], (hidden, n_actions), hidden)
    b3 = uniform(ks[5], (1, n_actions), hidden)
    return w1, b1, w2, b2, w3, b3


if __name__ == "__main__":
    key = jax.random.PRNGKey(0)
    k_x, k_p = jax.random.split(key)

    batch, obs_dim, hidden, n_actions = 64, 8, 64, 4
    x = jax.random.normal(k_x, (batch, obs_dim), jnp.float32)
    params = init_params(k_p, obs_dim, hidden, n_actions)
    w1, b1, w2, b2, w3, b3 = params

    # Plain-JAX reference (same math as the PyTorch module).
    h1 = jnp.tanh(x @ w1 + b1)
    h2 = jnp.tanh(h1 @ w2 + b2)
    ref = jax.nn.softmax(h2 @ w3 + b3, axis=-1)

    # f32 path: strict parity with the reference.
    out = actor_forward(x, *params, block_batch=256, matmul_dtype=jnp.float32)
    out = jax.block_until_ready(out)
    assert out.shape == (batch, n_actions)
    assert jnp.allclose(out, ref, atol=1e-5), "f32 kernel mismatch vs reference"
    assert jnp.allclose(jnp.sum(out, axis=-1), 1.0, atol=1e-5)

    # bf16-matmul path (v6e/v7x MXU optimization): relaxed tolerance.
    out_bf16 = actor_forward(x, *params, block_batch=256,
                             matmul_dtype=jnp.bfloat16)
    out_bf16 = jax.block_until_ready(out_bf16)
    assert out_bf16.shape == (batch, n_actions)
    assert jnp.allclose(out_bf16, ref, atol=2e-2), "bf16 kernel mismatch vs reference"
    assert jnp.allclose(jnp.sum(out_bf16, axis=-1), 1.0, atol=1e-3)

    print("KERNEL_OK")
</pallas_src>

<mosaic_0001>
module attributes {stable_mosaic.version = 11 : i64} {
  func.func @actor_kernel(%arg0: i32, %arg1: memref<64x8xf32, #tpu.memory_space<vmem>>, %arg2: memref<8x64xf32, #tpu.memory_space<vmem>>, %arg3: memref<1x64xf32, #tpu.memory_space<vmem>>, %arg4: memref<64x64xf32, #tpu.memory_space<vmem>>, %arg5: memref<1x64xf32, #tpu.memory_space<vmem>>, %arg6: memref<64x128xf32, #tpu.memory_space<vmem>>, %arg7: memref<1x128xf32, #tpu.memory_space<vmem>>, %arg8: memref<64x128xf32, #tpu.memory_space<vmem>>) attributes {dimension_semantics = [#tpu.dimension_semantics<parallel>], iteration_bounds = array<i64: 1>, scalar_prefetch = 0 : i64, scratch_operands = 0 : i64, tpu.core_type = #tpu.core_type<tc>, window_params = [{transform_indices = @transform_0, window_bounds = array<i64: 64, 8>}, {pipeline_mode = #tpu.pipeline_mode<synchronous>, transform_indices = @transform_1, window_bounds = array<i64: 8, 64>}, {pipeline_mode = #tpu.pipeline_mode<synchronous>, transform_indices = @transform_2, window_bounds = array<i64: 1, 64>}, {pipeline_mode = #tpu.pipeline_mode<synchronous>, transform_indices = @transform_3, window_bounds = array<i64: 64, 64>}, {pipeline_mode = #tpu.pipeline_mode<synchronous>, transform_indices = @transform_4, window_bounds = array<i64: 1, 64>}, {pipeline_mode = #tpu.pipeline_mode<synchronous>, transform_indices = @transform_5, window_bounds = array<i64: 64, 128>}, {pipeline_mode = #tpu.pipeline_mode<synchronous>, transform_indices = @transform_6, window_bounds = array<i64: 1, 128>}, {transform_indices = @transform_7, window_bounds = array<i64: 64, 128>}]} {
    %c0 = arith.constant 0 : index
    %c0_0 = arith.constant 0 : index
    %0 = vector.load %arg1[%c0, %c0_0] : memref<64x8xf32, #tpu.memory_space<vmem>>, vector<64x8xf32>
    %c0_1 = arith.constant 0 : index
    %c0_2 = arith.constant 0 : index
    %1 = vector.load %arg2[%c0_1, %c0_2] : memref<8x64xf32, #tpu.memory_space<vmem>>, vector<8x64xf32>
    %cst = arith.constant dense<0.000000e+00> : vector<64x64xf32>
    %2 = tpu.matmul %0, %1, %cst {dimension_numbers = #tpu.dot_dimension_numbers<[1], [0], [0], [1], [0, 0, 1, 1], [], []>} : vector<64x8xf32>, vector<8x64xf32>, vector<64x64xf32> -> vector<64x64xf32>
    %c0_3 = arith.constant 0 : index
    %c0_4 = arith.constant 0 : index
    %3 = vector.load %arg3[%c0_3, %c0_4] : memref<1x64xf32, #tpu.memory_space<vmem>>, vector<1x64xf32>
    %4 = vector.broadcast %3 : vector<1x64xf32> to vector<64x64xf32>
    %5 = arith.addf %2, %4 : vector<64x64xf32>
    %6 = math.tanh %5 : vector<64x64xf32>
    %c0_5 = arith.constant 0 : index
    %c0_6 = arith.constant 0 : index
    %7 = vector.load %arg4[%c0_5, %c0_6] : memref<64x64xf32, #tpu.memory_space<vmem>>, vector<64x64xf32>
    %cst_7 = arith.constant dense<0.000000e+00> : vector<64x64xf32>
    %8 = tpu.matmul %6, %7, %cst_7 {dimension_numbers = #tpu.dot_dimension_numbers<[1], [0], [0], [1], [0, 0, 1, 1], [], []>} : vector<64x64xf32>, vector<64x64xf32>, vector<64x64xf32> -> vector<64x64xf32>
    %c0_8 = arith.constant 0 : index
    %c0_9 = arith.constant 0 : index
    %9 = vector.load %arg5[%c0_8, %c0_9] : memref<1x64xf32, #tpu.memory_space<vmem>>, vector<1x64xf32>
    %10 = vector.broadcast %9 : vector<1x64xf32> to vector<64x64xf32>
    %11 = arith.addf %8, %10 : vector<64x64xf32>
    %12 = math.tanh %11 : vector<64x64xf32>
    %c0_10 = arith.constant 0 : index
    %c0_11 = arith.constant 0 : index
    %13 = vector.load %arg6[%c0_10, %c0_11] : memref<64x128xf32, #tpu.memory_space<vmem>>, vector<64x128xf32>
    %cst_12 = arith.constant dense<0.000000e+00> : vector<64x128xf32>
    %14 = tpu.matmul %12, %13, %cst_12 {dimension_numbers = #tpu.dot_dimension_numbers<[1], [0], [0], [1], [0, 0, 1, 1], [], []>} : vector<64x64xf32>, vector<64x128xf32>, vector<64x128xf32> -> vector<64x128xf32>
    %c0_13 = arith.constant 0 : index
    %c0_14 = arith.constant 0 : index
    %15 = vector.load %arg7[%c0_13, %c0_14] : memref<1x128xf32, #tpu.memory_space<vmem>>, vector<1x128xf32>
    %16 = vector.broadcast %15 : vector<1x128xf32> to vector<64x128xf32>
    %17 = arith.addf %14, %16 : vector<64x128xf32>
    %cst_15 = arith.constant dense<0xFF800000> : vector<64xf32>
    %18 = vector.multi_reduction <maximumf>, %17, %cst_15 [1] : vector<64x128xf32> to vector<64xf32>
    %19 = vector.shape_cast %18 : vector<64xf32> to vector<64x1xf32>
    %20 = vector.broadcast %19 : vector<64x1xf32> to vector<64x128xf32>
    %21 = arith.subf %17, %20 : vector<64x128xf32>
    %22 = math.exp %21 : vector<64x128xf32>
    %cst_16 = arith.constant dense<0.000000e+00> : vector<64xf32>
    %23 = vector.multi_reduction <add>, %22, %cst_16 [1] : vector<64x128xf32> to vector<64xf32>
    %24 = vector.shape_cast %23 : vector<64xf32> to vector<64x1xf32>
    %25 = tpu.reciprocal %24 : vector<64x1xf32> -> vector<64x1xf32>
    %26 = vector.broadcast %25 : vector<64x1xf32> to vector<64x128xf32>
    %27 = arith.mulf %22, %26 : vector<64x128xf32>
    %c0_17 = arith.constant 0 : index
    %c0_18 = arith.constant 0 : index
    %28 = vector.load %arg8[%c0_17, %c0_18] : memref<64x128xf32, #tpu.memory_space<vmem>>, vector<64x128xf32>
    tpu.vector_store %arg8[%c0_17, %c0_18], %27 {strides = array<i32>} : memref<64x128xf32, #tpu.memory_space<vmem>>, vector<64x128xf32>,
    return
  }
  func.func @transform_0(%arg0: i32) -> (i32, i32) {
    %c0_i32 = arith.constant 0 : i32
    %c0_i32_0 = arith.constant 0 : i32
    return %arg0, %c0_i32 : i32, i32
  }
  func.func @transform_1(%arg0: i32) -> (i32, i32) {
    %c0_i32 = arith.constant 0 : i32
    %c0_i32_0 = arith.constant 0 : i32
    %c0_i32_1 = arith.constant 0 : i32
    return %c0_i32, %c0_i32_0 : i32, i32
  }
  func.func @transform_2(%arg0: i32) -> (i32, i32) {
    %c0_i32 = arith.constant 0 : i32
    %c0_i32_0 = arith.constant 0 : i32
    %c0_i32_1 = arith.constant 0 : i32
    return %c0_i32, %c0_i32_0 : i32, i32
  }
  func.func @transform_3(%arg0: i32) -> (i32, i32) {
    %c0_i32 = arith.constant 0 : i32
    %c0_i32_0 = arith.constant 0 : i32
    %c0_i32_1 = arith.constant 0 : i32
    return %c0_i32, %c0_i32_0 : i32, i32
  }
  func.func @transform_4(%arg0: i32) -> (i32, i32) {
    %c0_i32 = arith.constant 0 : i32
    %c0_i32_0 = arith.constant 0 : i32
    %c0_i32_1 = arith.constant 0 : i32
    return %c0_i32, %c0_i32_0 : i32, i32
  }
  func.func @transform_5(%arg0: i32) -> (i32, i32) {
    %c0_i32 = arith.constant 0 : i32
    %c0_i32_0 = arith.constant 0 : i32
    %c0_i32_1 = arith.constant 0 : i32
    return %c0_i32, %c0_i32_0 : i32, i32
  }
  func.func @transform_6(%arg0: i32) -> (i32, i32) {
    %c0_i32 = arith.constant 0 : i32
    %c0_i32_0 = arith.constant 0 : i32
    %c0_i32_1 = arith.constant 0 : i32
    return %c0_i32, %c0_i32_0 : i32, i32
  }
  func.func @transform_7(%arg0: i32) -> (i32, i32) {
    %c0_i32 = arith.constant 0 : i32
    %c0_i32_0 = arith.constant 0 : i32
    return %arg0, %c0_i32 : i32, i32
  }
}

</mosaic_0001>

<llo_original>
// kernel: tpu_custom_call.1
$region0: #{tpu_custom_call.1}
  #allocation0 [shape = 'u32[]', space=smem, size = 0x4, offset = 0x4, fixed_abs, tag = 'smem constant byte address 0x4 - core index']
  #allocation1 [shape = 'u32[72,128]{1,0:T(1,128)}', space=vmem, size = 0x9000, scoped, tag = 'internal scratch']
  %s0 = inlined_call_operand.vmem [shape: f32[64,8], index: 0, kind: input, shape index: {}]
  %s1 = inlined_call_operand.vmem [shape: f32[8,64], index: 1, kind: input, shape index: {}]
  %s2 = inlined_call_operand.vmem [shape: f32[1,64], index: 2, kind: input, shape index: {}]
  %s3 = inlined_call_operand.vmem [shape: f32[64,64], index: 3, kind: input, shape index: {}]
  %s4 = inlined_call_operand.vmem [shape: f32[1,64], index: 4, kind: input, shape index: {}]
  %s5 = inlined_call_operand.hbm [shape: f32[64,128], index: 5, kind: input, shape index: {}]
  %s6 = inlined_call_operand.vmem [shape: f32[1,128], index: 6, kind: input, shape index: {}]
  %s7 = inlined_call_operand.hbm [shape: f32[64,128], index: 7, kind: output, shape index: {}]
  %s8 = sld [smem:[#allocation0]]
  $region42: #{tpu_custom_call.1} parent=0
    _
  %s10 = ssub.s32 1, %s8
  %s11 = scalar_select 0, %s10, %s8
  $region1: #{tpu_custom_call.1} parent=0
    #allocation2 [shape = 'u8[32768]{0}', space=vmem, size = 0x8000, scoped, tag = 'input window, operand 5, single buffered']
    #allocation3 [shape = 's32[1]{0}', space=sflag, size = 0x4, scoped, tag = 'scoped memory for tpu_custom_call.1']
    #allocation4 [shape = 's32[1]{0}', space=sflag, size = 0x4, scoped, tag = 'scoped memory for tpu_custom_call.1']
    #allocation5 [shape = 'u8[32768]{0}', space=vmem, size = 0x8000, scoped, tag = 'output window, operand 0, single buffered']
    %12 = vsyncpa [#allocation3], 0
    %13 = vsyncpa [#allocation4], 0
    // Predicated region
    $region2: #{tpu_custom_call.1} parent=1 // pred_check
      _
    $region3: #{tpu_custom_call.1} parent=1 // pred_check_branch
      %15 = sbr.rel (0) target = $region5
    $region4: #{tpu_custom_call.1} parent=1 // pred_region
      _
    $region5: #{tpu_custom_call.1} parent=1 // pred_fallthru
      _
    // Predicated region
    $region6: #{tpu_custom_call.1} parent=1 // pred_check
      _
    $region7: #{tpu_custom_call.1} parent=1 // pred_check_branch
      %17 = sbr.rel (0) target = $region9
    $region8: #{tpu_custom_call.1} parent=1 // pred_region
      _
    $region9: #{tpu_custom_call.1} parent=1 // pred_fallthru
      _
    // Predicated region
    $region10: #{tpu_custom_call.1} parent=1 // pred_check
      _
    $region11: #{tpu_custom_call.1} parent=1 // pred_check_branch
      %19 = sbr.rel (0) target = $region13
    $region12: #{tpu_custom_call.1} parent=1 // pred_region
      _
    $region13: #{tpu_custom_call.1} parent=1 // pred_fallthru
      _
    // Predicated region
    $region14: #{tpu_custom_call.1} parent=1 // pred_check
      _
    $region15: #{tpu_custom_call.1} parent=1 // pred_check_branch
      %21 = sbr.rel (0) target = $region17
    $region16: #{tpu_custom_call.1} parent=1 // pred_region
      _
    $region17: #{tpu_custom_call.1} parent=1 // pred_fallthru
      _
    // Predicated region
    $region18: #{tpu_custom_call.1} parent=1 // pred_check
      _
    $region19: #{tpu_custom_call.1} parent=1 // pred_check_branch
      %23 = sbr.rel (0) target = $region21
    $region20: #{tpu_custom_call.1} parent=1 // pred_region
      _
    $region21: #{tpu_custom_call.1} parent=1 // pred_fallthru
      _
    // Predicated region
    $region22: #{tpu_custom_call.1} parent=1 // pred_check
      _
    $region23: #{tpu_custom_call.1} parent=1 // pred_check_branch
      %25 = sbr.rel (0) target = $region25
    $region24: #{tpu_custom_call.1} parent=1 // pred_region
      %27 = vsyncadd [#allocation3], 0
      %s28 = sshll.u32 %s5, 4
      %s29 = int_to_ptr.hbm [resolvable:$true] %s28
      %s30 = sshll.u32 [#allocation2], 4
      %s31 = int_to_ptr.vmem [resolvable:$true] %s30
      %36 = dma.hbm_to_vmem [thread:$0]  %s29, 1024, %s31, [#allocation3], 128, 128, 8
    $region25: #{tpu_custom_call.1} parent=1 // pred_fallthru
      _
    // Predicated region
    $region26: #{tpu_custom_call.1} parent=1 // pred_check
      _
    $region27: #{tpu_custom_call.1} parent=1 // pred_check_branch
      %38 = sbr.rel (0) target = $region29
    $region28: #{tpu_custom_call.1} parent=1 // pred_region
      _
    $region29: #{tpu_custom_call.1} parent=1 // pred_fallthru
      _
    // Predicated region
    $region30: #{tpu_custom_call.1} parent=1 // pred_check
      _
    $region31: #{tpu_custom_call.1} parent=1 // pred_check_branch
      %40 = sbr.rel (0) target = $region33
    $region32: #{tpu_custom_call.1} parent=1 // pred_region
      %42 = dma.done [#allocation3], 1024
    $region33: #{tpu_custom_call.1} parent=1 // pred_fallthru
      _
    %v43 = vld [vmem:[%s0] sm:$0xff]
    %v44 = vld [vmem:[%s0 + $0x8] sm:$0xff]
    %v45 = vld [vmem:[%s0 + $0x10] sm:$0xff]
    %v46 = vld [vmem:[%s0 + $0x18] sm:$0xff]
    %v47 = vld [vmem:[%s0 + $0x20] sm:$0xff]
    %v48 = vld [vmem:[%s0 + $0x28] sm:$0xff]
    %v49 = vld [vmem:[%s0 + $0x30] sm:$0xff]
    %v50 = vld [vmem:[%s0 + $0x38] sm:$0xff]
    %v51 = vld [vmem:[%s1] sm:$0xff]
    %v52 = vld [vmem:[%s2] sm:$0x1]
    %v54 = vperm.slane %v52, 0
    %vm56 = vcmask 64512
    %v58 = vsel %vm56, %v43, 0
    %v61 = vsel %vm56, %v44, 0
    %v64 = vsel %vm56, %v45, 0
    %v67 = vsel %vm56, %v46, 0
    %v70 = vsel %vm56, %v47, 0
    %v73 = vsel %vm56, %v48, 0
    %v76 = vsel %vm56, %v49, 0
    %v79 = vsel %vm56, %v50, 0
    %81 = vmatpush.msra.mxu0 0.0
    %82 = vmatpush.msra.mxu0 0.0
    %83 = vmatpush.msra.mxu0 0.0
    %84 = vmatpush.msra.mxu0 0.0
    %85 = vmatpush.msra.mxu0 0.0
    %86 = vmatpush.msra.mxu0 0.0
    %87 = vmatpush.msra.mxu0 0.0
    %88 = vmatpush.msra.mxu0 0.0
    %89 = vmatpush.msra.mxu0 0.0
    %90 = vmatpush.msra.mxu0 0.0
    %91 = vmatpush.msra.mxu0 0.0
    %92 = vmatpush.msra.mxu0 0.0
    %93 = vmatpush.msra.mxu0 0.0
    %94 = vmatpush.msra.mxu0 0.0
    %95 = vmatpush.msra.mxu0 0.0
    %96 = vmatpush.msra.mxu0 %v51
    %97 = vmatmul.f32.gmra.mxu0 %v58
    %v98 = vpop.f32.mrf.mxu0
    %v99 = vadd.f32 %v54, %v98
    %100 = vmatmul.f32.gmra.mxu0 %v61
    %v101 = vpop.f32.mrf.mxu0
    %v102 = vadd.f32 %v54, %v101
    %103 = vmatmul.f32.gmra.mxu0 %v64
    %v104 = vpop.f32.mrf.mxu0
    %v105 = vadd.f32 %v54, %v104
    %106 = vmatmul.f32.gmra.mxu0 %v67
    %v107 = vpop.f32.mrf.mxu0
    %v108 = vadd.f32 %v54, %v107
    %109 = vmatmul.f32.gmra.mxu0 %v70
    %v110 = vpop.f32.mrf.mxu0
    %v111 = vadd.f32 %v54, %v110
    %112 = vmatmul.f32.gmra.mxu0 %v73
    %v113 = vpop.f32.mrf.mxu0
    %v114 = vadd.f32 %v54, %v113
    %115 = vmatmul.f32.gmra.mxu0 %v76
    %v116 = vpop.f32.mrf.mxu0
    %v117 = vadd.f32 %v54, %v116
    %118 = vmatmul.f32.gmra.mxu0 %v79
    %v119 = vpop.f32.mrf.mxu0
    %v120 = vadd.f32 %v54, %v119
    %121 = vdwg.mxu0
    %v122 = vtanh.pop %v99
    %v123 = vtanh.pop %v102
    %v124 = vtanh.pop %v105
    %v125 = vtanh.pop %v108
    %v126 = vtanh.pop %v111
    %v127 = vtanh.pop %v114
    %v128 = vtanh.pop %v117
    %v129 = vtanh.pop %v120
    %v130 = vld [vmem:[%s3] sm:$0xff]
    %v131 = vld [vmem:[%s3 + $0x8] sm:$0xff]
    %v132 = vld [vmem:[%s3 + $0x10] sm:$0xff]
    %v133 = vld [vmem:[%s3 + $0x18] sm:$0xff]
    %v134 = vld [vmem:[%s3 + $0x20] sm:$0xff]
    %v135 = vld [vmem:[%s3 + $0x28] sm:$0xff]
    %v136 = vld [vmem:[%s3 + $0x30] sm:$0xff]
    %v137 = vld [vmem:[%s3 + $0x38] sm:$0xff]
    %v138 = vld [vmem:[%s4] sm:$0x1]
    %v140 = vperm.slane %v138, 0
    %vm142 = vcmask 523264
    %v144 = vsel %vm142, %v122, 0
    %v147 = vsel %vm142, %v123, 0
    %v150 = vsel %vm142, %v124, 0
    %v153 = vsel %vm142, %v125, 0
    %v156 = vsel %vm142, %v126, 0
    %v159 = vsel %vm142, %v127, 0
    %v162 = vsel %vm142, %v128, 0
    %v165 = vsel %vm142, %v129, 0
    %167 = vmatpush.msra.mxu0 0.0
    %168 = vmatpush.msra.mxu0 0.0
    %169 = vmatpush.msra.mxu0 0.0
    %170 = vmatpush.msra.mxu0 0.0
    %171 = vmatpush.msra.mxu0 0.0
    %172 = vmatpush.msra.mxu0 0.0
    %173 = vmatpush.msra.mxu0 0.0
    %174 = vmatpush.msra.mxu0 0.0
    %175 = vmatpush.msra.mxu0 %v137
    %176 = vmatpush.msra.mxu0 %v136
    %177 = vmatpush.msra.mxu0 %v135
    %178 = vmatpush.msra.mxu0 %v134
    %179 = vmatpush.msra.mxu0 %v133
    %180 = vmatpush.msra.mxu0 %v132
    %181 = vmatpush.msra.mxu0 %v131
    %182 = vmatpush.msra.mxu0 %v130
    %183 = vmatmul.f32.gmra.mxu0 %v144
    %v184 = vpop.f32.mrf.mxu0
    %v185 = vadd.f32 %v140, %v184
    %186 = vmatmul.f32.gmra.mxu0 %v147
    %v187 = vpop.f32.mrf.mxu0
    %v188 = vadd.f32 %v140, %v187
    %189 = vmatmul.f32.gmra.mxu0 %v150
    %v190 = vpop.f32.mrf.mxu0
    %v191 = vadd.f32 %v140, %v190
    %192 = vmatmul.f32.gmra.mxu0 %v153
    %v193 = vpop.f32.mrf.mxu0
    %v194 = vadd.f32 %v140, %v193
    %195 = vmatmul.f32.gmra.mxu0 %v156
    %v196 = vpop.f32.mrf.mxu0
    %v197 = vadd.f32 %v140, %v196
    %198 = vmatmul.f32.gmra.mxu0 %v159
    %v199 = vpop.f32.mrf.mxu0
    %v200 = vadd.f32 %v140, %v199
    %201 = vmatmul.f32.gmra.mxu0 %v162
    %v202 = vpop.f32.mrf.mxu0
    %v203 = vadd.f32 %v140, %v202
    %204 = vmatmul.f32.gmra.mxu0 %v165
    %v205 = vpop.f32.mrf.mxu0
    %v206 = vadd.f32 %v140, %v205
    %207 = vdwg.mxu0
    %v208 = vtanh.pop %v185
    %v209 = vtanh.pop %v188
    %v210 = vtanh.pop %v191
    %v211 = vtanh.pop %v194
    %v212 = vtanh.pop %v197
    %v213 = vtanh.pop %v200
    %v214 = vtanh.pop %v203
    %v215 = vtanh.pop %v206
    %v216 = vld [vmem:[#allocation2] sm:$0xff]
    %v217 = vld [vmem:[#allocation2 + $0x8] sm:$0xff]
    %v218 = vld [vmem:[#allocation2 + $0x10] sm:$0xff]
    %v219 = vld [vmem:[#allocation2 + $0x18] sm:$0xff]
    %v220 = vld [vmem:[#allocation2 + $0x20] sm:$0xff]
    %v221 = vld [vmem:[#allocation2 + $0x28] sm:$0xff]
    %v222 = vld [vmem:[#allocation2 + $0x30] sm:$0xff]
    %v223 = vld [vmem:[#allocation2 + $0x38] sm:$0xff]
    %v224 = vld [vmem:[%s6] sm:$0x1]
    %v226 = vperm.slane %v224, 0
    %v229 = vsel %vm142, %v208, 0
    %v232 = vsel %vm142, %v209, 0
    %v235 = vsel %vm142, %v210, 0
    %v238 = vsel %vm142, %v211, 0
    %v241 = vsel %vm142, %v212, 0
    %v244 = vsel %vm142, %v213, 0
    %v247 = vsel %vm142, %v214, 0
    %v250 = vsel %vm142, %v215, 0
    %252 = vmatpush.msra.mxu0 0.0
    %253 = vmatpush.msra.mxu0 0.0
    %254 = vmatpush.msra.mxu0 0.0
    %255 = vmatpush.msra.mxu0 0.0
    %256 = vmatpush.msra.mxu0 0.0
    %257 = vmatpush.msra.mxu0 0.0
    %258 = vmatpush.msra.mxu0 0.0
    %259 = vmatpush.msra.mxu0 0.0
    %260 = vmatpush.msra.mxu0 %v223
    %261 = vmatpush.msra.mxu0 %v222
    %262 = vmatpush.msra.mxu0 %v221
    %263 = vmatpush.msra.mxu0 %v220
    %264 = vmatpush.msra.mxu0 %v219
    %265 = vmatpush.msra.mxu0 %v218
    %266 = vmatpush.msra.mxu0 %v217
    %267 = vmatpush.msra.mxu0 %v216
    %268 = vmatmul.f32.gmra.mxu0 %v229
    %v269 = vpop.f32.mrf.mxu0
    %v270 = vadd.f32 %v226, %v269
    %271 = vmatmul.f32.gmra.mxu0 %v232
    %v272 = vpop.f32.mrf.mxu0
    %v273 = vadd.f32 %v226, %v272
    %274 = vmatmul.f32.gmra.mxu0 %v235
    %v275 = vpop.f32.mrf.mxu0
    %v276 = vadd.f32 %v226, %v275
    %277 = vmatmul.f32.gmra.mxu0 %v238
    %v278 = vpop.f32.mrf.mxu0
    %v279 = vadd.f32 %v226, %v278
    %280 = vmatmul.f32.gmra.mxu0 %v241
    %v281 = vpop.f32.mrf.mxu0
    %v282 = vadd.f32 %v226, %v281
    %283 = vmatmul.f32.gmra.mxu0 %v244
    %v284 = vpop.f32.mrf.mxu0
    %v285 = vadd.f32 %v226, %v284
    %286 = vmatmul.f32.gmra.mxu0 %v247
    %v287 = vpop.f32.mrf.mxu0
    %v288 = vadd.f32 %v226, %v287
    %289 = vmatmul.f32.gmra.mxu0 %v250
    %v290 = vpop.f32.mrf.mxu0
    %v291 = vadd.f32 %v226, %v290
    %292 = vdwg.mxu0
    %293 = vmax.xlane.f32.xlu0 %v270
    %v294 = vpop.xlane.xlu0 %293
    %295 = vmax.xlane.f32.xlu0 %v273
    %v296 = vpop.xlane.xlu0 %295
    %297 = vmax.xlane.f32.xlu0 %v276
    %v298 = vpop.xlane.xlu0 %297
    %299 = vmax.xlane.f32.xlu0 %v279
    %v300 = vpop.xlane.xlu0 %299
    %301 = vmax.xlane.f32.xlu0 %v282
    %v302 = vpop.xlane.xlu0 %301
    %303 = vmax.xlane.f32.xlu0 %v285
    %v304 = vpop.xlane.xlu0 %303
    %305 = vmax.xlane.f32.xlu0 %v288
    %v306 = vpop.xlane.xlu0 %305
    %307 = vmax.xlane.f32.xlu0 %v291
    %v308 = vpop.xlane.xlu0 %307
    %v309 = vsub.f32 %v270, %v294
    %v310 = vsub.f32 %v273, %v296
    %v311 = vsub.f32 %v276, %v298
    %v312 = vsub.f32 %v279, %v300
    %v313 = vsub.f32 %v282, %v302
    %v314 = vsub.f32 %v285, %v304
    %v315 = vsub.f32 %v288, %v306
    %v316 = vsub.f32 %v291, %v308
    %v317 = vmul.f32 %v309, 1.442695
    %v318 = vpow.pop %v317
    %v319 = vmul.f32 %v310, 1.442695
    %v320 = vpow.pop %v319
    %v321 = vmul.f32 %v311, 1.442695
    %v322 = vpow.pop %v321
    %v323 = vmul.f32 %v312, 1.442695
    %v324 = vpow.pop %v323
    %v325 = vmul.f32 %v313, 1.442695
    %v326 = vpow.pop %v325
    %v327 = vmul.f32 %v314, 1.442695
    %v328 = vpow.pop %v327
    %v329 = vmul.f32 %v315, 1.442695
    %v330 = vpow.pop %v329
    %v331 = vmul.f32 %v316, 1.442695
    %v332 = vpow.pop %v331
    %333 = vadd.xlane.f32.xlu0 %v318
    %v334 = vpop.xlane.xlu0 %333
    %335 = vadd.xlane.f32.xlu0 %v320
    %v336 = vpop.xlane.xlu0 %335
    %337 = vadd.xlane.f32.xlu0 %v322
    %v338 = vpop.xlane.xlu0 %337
    %339 = vadd.xlane.f32.xlu0 %v324
    %v340 = vpop.xlane.xlu0 %339
    %341 = vadd.xlane.f32.xlu0 %v326
    %v342 = vpop.xlane.xlu0 %341
    %343 = vadd.xlane.f32.xlu0 %v328
    %v344 = vpop.xlane.xlu0 %343
    %345 = vadd.xlane.f32.xlu0 %v330
    %v346 = vpop.xlane.xlu0 %345
    %347 = vadd.xlane.f32.xlu0 %v332
    %v348 = vpop.xlane.xlu0 %347
    %v349 = vrcp.pop %v334
    %v350 = vmul.f32 %v334, %v349
    %v351 = vsub.f32 1.0, %v350
    %v352 = vmul.f32 %v349, %v351
    %v353 = vadd.f32 %v349, %v352
    %vm354 = vweird.f32 %v334
    %vm355 = vweird.f32 %v349
    %vm356 = vmor %vm354, %vm355
    %v357 = vsel %vm356, %v349, %v353
    %v358 = vand.u32 2147483647, %v334
    %vm359 = vcmp.eq.f32.partialorder %v358, 8.507059e+37
    %v360 = vand.u32 %v334, 2147483648
    %v361 = vor.u32 1.1754944e-38, %v360
    %v362 = vsel %vm359, %v361, %v357
    %v363 = vrcp.pop %v336
    %v364 = vmul.f32 %v336, %v363
    %v365 = vsub.f32 1.0, %v364
    %v366 = vmul.f32 %v363, %v365
    %v367 = vadd.f32 %v363, %v366
    %vm368 = vweird.f32 %v336
    %vm369 = vweird.f32 %v363
    %vm370 = vmor %vm368, %vm369
    %v371 = vsel %vm370, %v363, %v367
    %v372 = vand.u32 2147483647, %v336
    %vm373 = vcmp.eq.f32.partialorder %v372, 8.507059e+37
    %v374 = vand.u32 %v336, 2147483648
    %v375 = vor.u32 1.1754944e-38, %v374
    %v376 = vsel %vm373, %v375, %v371
    %v377 = vrcp.pop %v338
    %v378 = vmul.f32 %v338, %v377
    %v379 = vsub.f32 1.0, %v378
    %v380 = vmul.f32 %v377, %v379
    %v381 = vadd.f32 %v377, %v380
    %vm382 = vweird.f32 %v338
    %vm383 = vweird.f32 %v377
    %vm384 = vmor %vm382, %vm383
    %v385 = vsel %vm384, %v377, %v381
    %v386 = vand.u32 2147483647, %v338
    %vm387 = vcmp.eq.f32.partialorder %v386, 8.507059e+37
    %v388 = vand.u32 %v338, 2147483648
    %v389 = vor.u32 1.1754944e-38, %v388
    %v390 = vsel %vm387, %v389, %v385
    %v391 = vrcp.pop %v340
    %v392 = vmul.f32 %v340, %v391
    %v393 = vsub.f32 1.0, %v392
    %v394 = vmul.f32 %v391, %v393
    %v395 = vadd.f32 %v391, %v394
    %vm396 = vweird.f32 %v340
    %vm397 = vweird.f32 %v391
    %vm398 = vmor %vm396, %vm397
    %v399 = vsel %vm398, %v391, %v395
    %v400 = vand.u32 2147483647, %v340
    %vm401 = vcmp.eq.f32.partialorder %v400, 8.507059e+37
    %v402 = vand.u32 %v340, 2147483648
    %v403 = vor.u32 1.1754944e-38, %v402
    %v404 = vsel %vm401, %v403, %v399
    %v405 = vrcp.pop %v342
    %v406 = vmul.f32 %v342, %v405
    %v407 = vsub.f32 1.0, %v406
    %v408 = vmul.f32 %v405, %v407
    %v409 = vadd.f32 %v405, %v408
    %vm410 = vweird.f32 %v342
    %vm411 = vweird.f32 %v405
    %vm412 = vmor %vm410, %vm411
    %v413 = vsel %vm412, %v405, %v409
    %v414 = vand.u32 2147483647, %v342
    %vm415 = vcmp.eq.f32.partialorder %v414, 8.507059e+37
    %v416 = vand.u32 %v342, 2147483648
    %v417 = vor.u32 1.1754944e-38, %v416
    %v418 = vsel %vm415, %v417, %v413
    %v419 = vrcp.pop %v344
    %v420 = vmul.f32 %v344, %v419
    %v421 = vsub.f32 1.0, %v420
    %v422 = vmul.f32 %v419, %v421
    %v423 = vadd.f32 %v419, %v422
    %vm424 = vweird.f32 %v344
    %vm425 = vweird.f32 %v419
    %vm426 = vmor %vm424, %vm425
    %v427 = vsel %vm426, %v419, %v423
    %v428 = vand.u32 2147483647, %v344
    %vm429 = vcmp.eq.f32.partialorder %v428, 8.507059e+37
    %v430 = vand.u32 %v344, 2147483648
    %v431 = vor.u32 1.1754944e-38, %v430
    %v432 = vsel %vm429, %v431, %v427
    %v433 = vrcp.pop %v346
    %v434 = vmul.f32 %v346, %v433
    %v435 = vsub.f32 1.0, %v434
    %v436 = vmul.f32 %v433, %v435
    %v437 = vadd.f32 %v433, %v436
    %vm438 = vweird.f32 %v346
    %vm439 = vweird.f32 %v433
    %vm440 = vmor %vm438, %vm439
    %v441 = vsel %vm440, %v433, %v437
    %v442 = vand.u32 2147483647, %v346
    %vm443 = vcmp.eq.f32.partialorder %v442, 8.507059e+37
    %v444 = vand.u32 %v346, 2147483648
    %v445 = vor.u32 1.1754944e-38, %v444
    %v446 = vsel %vm443, %v445, %v441
    %v447 = vrcp.pop %v348
    %v448 = vmul.f32 %v348, %v447
    %v449 = vsub.f32 1.0, %v448
    %v450 = vmul.f32 %v447, %v449
    %v451 = vadd.f32 %v447, %v450
    %vm452 = vweird.f32 %v348
    %vm453 = vweird.f32 %v447
    %vm454 = vmor %vm452, %vm453
    %v455 = vsel %vm454, %v447, %v451
    %v456 = vand.u32 2147483647, %v348
    %vm457 = vcmp.eq.f32.partialorder %v456, 8.507059e+37
    %v458 = vand.u32 %v348, 2147483648
    %v459 = vor.u32 1.1754944e-38, %v458
    %v460 = vsel %vm457, %v459, %v455
    %v461 = vmul.f32 %v318, %v362
    %v462 = vmul.f32 %v320, %v376
    %v463 = vmul.f32 %v322, %v390
    %v464 = vmul.f32 %v324, %v404
    %v465 = vmul.f32 %v326, %v418
    %v466 = vmul.f32 %v328, %v432
    %v467 = vmul.f32 %v330, %v446
    %v468 = vmul.f32 %v332, %v460
    %469 = vst [vmem:[#allocation5] sm:$0xff] %v461
    %470 = vst [vmem:[#allocation5 + $0x8] sm:$0xff] %v462
    %471 = vst [vmem:[#allocation5 + $0x10] sm:$0xff] %v463
    %472 = vst [vmem:[#allocation5 + $0x18] sm:$0xff] %v464
    %473 = vst [vmem:[#allocation5 + $0x20] sm:$0xff] %v465
    %474 = vst [vmem:[#allocation5 + $0x28] sm:$0xff] %v466
    %475 = vst [vmem:[#allocation5 + $0x30] sm:$0xff] %v467
    %476 = vst [vmem:[#allocation5 + $0x38] sm:$0xff] %v468
    // Predicated region
    $region34: #{tpu_custom_call.1} parent=1 // pred_check
      _
    $region35: #{tpu_custom_call.1} parent=1 // pred_check_branch
      %478 = sbr.rel (0) target = $region37
    $region36: #{tpu_custom_call.1} parent=1 // pred_region
      %480 = vsyncadd [#allocation4], 0
      %s481 = sshll.u32 [#allocation5], 4
      %s482 = int_to_ptr.vmem [resolvable:$true] %s481
      %s483 = sshll.u32 %s7, 4
      %s484 = int_to_ptr.hbm [resolvable:$true] %s483
      %489 = dma.vmem_to_hbm [thread:$0]  %s482, 1024, %s484, [#allocation4], 128, 128, 8
    $region37: #{tpu_custom_call.1} parent=1 // pred_fallthru
      _
    // Predicated region
    $region38: #{tpu_custom_call.1} parent=1 // pred_check
      _
    $region39: #{tpu_custom_call.1} parent=1 // pred_check_branch
      %491 = sbr.rel (0) target = $region41
    $region40: #{tpu_custom_call.1} parent=1 // pred_region
      %493 = dma.done [#allocation4], 1024
    $region41: #{tpu_custom_call.1} parent=1 // pred_fallthru
      _
    %494 = vsyncpa [#allocation3], 1
    %495 = vsyncpa [#allocation4], 1

</llo_original>
